<compile_context>
chip_gen: v7x
topology: tpu7x:2x2x1
jax: 0.10.0
libtpu: 0.0.40
codegen_flags: <defaults>
</compile_context>

<pallas_src>
import jax
import jax.numpy as jnp
from jax.experimental import pallas as pl
from jax.experimental.pallas import tpu as pltpu

_LANE = 128
_VMEM_BUDGET = 44 * 1024 * 1024          # leave headroom under v7x's 64 MiB


def _round_up(x, m):
    return ((x + m - 1) // m) * m


# --------------------------------------------------------------------------
# Kernels
# --------------------------------------------------------------------------
def _gated_attn_kernel_c1(x_ref, wab_ref, bab_ref, wc_ref, bc_ref, out_ref):
    """n_classes == 1: VPU multiply + XLU reduce projection, lane-dense row store."""
    x = x_ref[...]                                            # (tn, L) bf16
    # Fused attention_a | attention_b: one MXU pass against the packed (L, 2D)
    # weight, f32 accumulation, f32 bias add.
    h = (jnp.dot(x, wab_ref[...], preferred_element_type=jnp.float32)
         + bab_ref[...])                                      # (tn, 2D) f32
    d = h.shape[-1] // 2
    gated = jnp.tanh(h[:, :d]) * jax.nn.sigmoid(h[:, d:])     # (tn, D) f32
    # attention_c with a 1-wide output: VPU multiply + lane reduce (no 1-lane
    # MXU pass).  wc_ref is the (1, D) weight row, bc_ref is (1, 1).
    score = (jnp.sum(gated * wc_ref[...], axis=-1, keepdims=True)
             + bc_ref[...])                                   # (tn, 1) f32
    # Lane-dense writeback: transpose the tiny score column to a (1, tn) row
    # (XLU has slack) so the store is unmasked and only tn*4 bytes per tile.
    out_ref[...] = score.T.astype(out_ref.dtype)              # (1, tn)


def _gated_attn_kernel_general(x_ref, wab_ref, bab_ref, wc_ref, bc_ref, out_ref):
    """General n_classes: Wc zero-padded to a multiple of 128 lanes (MXU path)."""
    x = x_ref[...]                                            # (tn, L) bf16
    h = (jnp.dot(x, wab_ref[...], preferred_element_type=jnp.float32)
         + bab_ref[...])                                      # (tn, 2D) f32
    d = h.shape[-1] // 2
    gated = jnp.tanh(h[:, :d]) * jax.nn.sigmoid(h[:, d:])     # (tn, D) f32
    out = (jnp.dot(gated.astype(wc_ref.dtype), wc_ref[...],
                   preferred_element_type=jnp.float32)
           + bc_ref[...])                                     # (tn, C_pad) f32
    # TODO(synk): for 1 < C <= ~16 the (tn, 128) f32 store wastes (128-C)/128
    # of the output bandwidth; a transposed (C, tn) store or bf16 out block
    # would reclaim it.  Left f32/lane-padded to keep this path simple.
    out_ref[...] = out.astype(out_ref.dtype)


# --------------------------------------------------------------------------
# One-time parameter packing (hoist out of the per-call hot path)
# --------------------------------------------------------------------------
def pack_attn_params(wa, ba, wb, bb, wc, bc):
    """Packs Wa|Wb into one (L, 2D) bf16 weight, ba|bb into (1, 2D) f32, and
    prepares Wc/bc for the chosen projection path.  Call once and reuse."""
    wab = jnp.concatenate([wa, wb], axis=1).astype(jnp.bfloat16)   # (L, 2D)
    bab = jnp.concatenate([ba, bb], axis=1).astype(jnp.float32)    # (1, 2D)
    C = wc.shape[1]
    if C == 1:
        wc_arg = wc.astype(jnp.float32).T                    # (1, D) f32 (VPU path)
        bc_arg = bc.astype(jnp.float32).reshape(1, 1)        # (1, 1)
    else:
        c_pad = _round_up(C, _LANE)
        wc_arg = jnp.pad(wc, ((0, 0), (0, c_pad - C))).astype(jnp.bfloat16)
        bc_arg = jnp.pad(bc, ((0, 0), (0, c_pad - C))).astype(jnp.float32)
    return (wab, bab, wc_arg, bc_arg, C)


# --------------------------------------------------------------------------
# Tiling
# --------------------------------------------------------------------------
def _choose_tile_n(N, vmem_est, max_tile=2048):
    # Small inputs: a single block rounded to 16 rows (bf16 packs 16 rows/vreg).
    if N <= 512:
        return _round_up(N, 16)
    tile = max(256, _round_up(max_tile, 256))
    # Fit the double-buffered tiles + f32 intermediates inside the VMEM budget.
    while tile > 256 and vmem_est(tile) > _VMEM_BUDGET:
        tile -= 256
    # v7x megacore: keep >= 2 grid steps so both TensorCores get work
    # (harmless on single-TC v5e/v6e).
    tile = min(tile, _round_up((N + 1) // 2, 256))
    # Bound dead-row padding to ~10% of N (floor: 256-row tiles).
    while tile > 256 and (_round_up(N, tile) - N) > N // 10:
        tile -= 256
    return tile


# --------------------------------------------------------------------------
# Wrapper
# --------------------------------------------------------------------------
def attn_net_gated_packed(x, packed, *, max_tile_n=2048):
    """A = (tanh(xWa+ba) * sigmoid(xWb+bb)) Wc + bc, with packed params."""
    wab, bab, wc_arg, bc_arg, C = packed
    N, L = x.shape
    D2 = wab.shape[1]
    D = D2 // 2
    assert L % _LANE == 0 and D % _LANE == 0, "L and D must be multiples of 128"

    x_in = x.astype(jnp.bfloat16)

    if C == 1:
        kernel = _gated_attn_kernel_c1
        out_row_bytes = 4                               # one f32 score per row
        wc_spec = pl.BlockSpec((1, D), lambda i: (0, 0))
        bc_spec = pl.BlockSpec((1, 1), lambda i: (0, 0))
    else:
        kernel = _gated_attn_kernel_general
        c_pad = wc_arg.shape[1]
        out_row_bytes = c_pad * 4
        wc_spec = pl.BlockSpec((D, c_pad), lambda i: (0, 0))
        bc_spec = pl.BlockSpec((1, c_pad), lambda i: (0, 0))

    weight_bytes = (wab.size * wab.dtype.itemsize + bab.size * 4
                    + wc_arg.size * wc_arg.dtype.itemsize + bc_arg.size * 4)

    def _vmem_est(tn):
        x_tiles = 2 * tn * L * 2                        # double-buffered bf16 x
        out_tiles = 2 * tn * out_row_bytes              # double-buffered out
        weights = 2 * weight_bytes                      # grid-invariant blocks
        interm = tn * D2 * 4 + 3 * tn * D * 4           # h + a/b/gated f32 temps
        return x_tiles + out_tiles + weights + interm

    tile_n = _choose_tile_n(N, _vmem_est, max_tile=max_tile_n)
    n_pad = _round_up(N, tile_n)
    if n_pad != N:
        x_in = jnp.pad(x_in, ((0, n_pad - N), (0, 0)))
    grid = (n_pad // tile_n,)

    vmem_limit = max(32 * 1024 * 1024,
                     min(56 * 1024 * 1024, int(1.25 * _vmem_est(tile_n))))

    if C == 1:
        out_shape = jax.ShapeDtypeStruct((1, n_pad), jnp.float32)
        out_spec = pl.BlockSpec((1, tile_n), lambda i: (0, i))
    else:
        out_shape = jax.ShapeDtypeStruct((n_pad, c_pad), jnp.float32)
        out_spec = pl.BlockSpec((tile_n, c_pad), lambda i: (i, 0))

    out_padded = pl.pallas_call(
        kernel,
        out_shape=out_shape,
        grid_spec=pltpu.PrefetchScalarGridSpec(
            num_scalar_prefetch=0,
            grid=grid,
            in_specs=[
                pl.BlockSpec((tile_n, L), lambda i: (i, 0)),   # x tile
                pl.BlockSpec((L, D2), lambda i: (0, 0)),       # Wa|Wb fused
                pl.BlockSpec((1, D2), lambda i: (0, 0)),       # ba|bb fused
                wc_spec,                                       # Wc
                bc_spec,                                       # bc
            ],
            out_specs=out_spec,
        ),
        compiler_params=pltpu.CompilerParams(
            dimension_semantics=("parallel",),
            vmem_limit_bytes=vmem_limit,
        ),
    )(x_in, wab, bab, wc_arg, bc_arg)

    if C == 1:
        return out_padded[0, :N].reshape(N, 1)
    return out_padded[:N, :C]


def attn_net_gated(x, wa, ba, wb, bb, wc, bc, *, max_tile_n=2048):
    """Convenience wrapper.  For repeated calls, hoist pack_attn_params()."""
    return attn_net_gated_packed(x, pack_attn_params(wa, ba, wb, bb, wc, bc),
                                 max_tile_n=max_tile_n)


def _init_linear(key, fan_in, fan_out):
    # Deterministic PyTorch-style init: U(-1/sqrt(fan_in), 1/sqrt(fan_in)).
    kw, kb = jax.random.split(key)
    bound = 1.0 / (fan_in ** 0.5)
    w = jax.random.uniform(kw, (fan_in, fan_out), jnp.float32, -bound, bound)
    b = jax.random.uniform(kb, (1, fan_out), jnp.float32, -bound, bound)
    return w, b


if __name__ == "__main__":
    # Small shapes consistent with the module (module defaults L=1024, D=256,
    # n_classes=1).  N deliberately not a multiple of 16/256 to exercise the
    # padding + slice path.
    N, L, D, C = 37, 256, 128, 1

    key = jax.random.PRNGKey(0)
    kx, ka, kb, kc = jax.random.split(key, 4)

    x = jax.random.normal(kx, (N, L), jnp.float32)
    wa, ba = _init_linear(ka, L, D)   # attention_a Linear(L, D)
    wb, bb = _init_linear(kb, L, D)   # attention_b Linear(L, D)
    wc, bc = _init_linear(kc, D, C)   # attention_c Linear(D, n_classes)

    params = pack_attn_params(wa, ba, wb, bb, wc, bc)   # hoisted one-time packing
    out = jax.block_until_ready(attn_net_gated_packed(x, params))
    assert out.shape == (N, C)

    # Reference with the same bf16-operand / f32-accumulate matmul contract.
    xb = x.astype(jnp.bfloat16)
    a_ref = jnp.tanh(jnp.dot(xb, wa.astype(jnp.bfloat16),
                             preferred_element_type=jnp.float32) + ba)
    b_ref = jax.nn.sigmoid(jnp.dot(xb, wb.astype(jnp.bfloat16),
                                   preferred_element_type=jnp.float32) + bb)
    ref = jnp.dot(a_ref * b_ref, wc, preferred_element_type=jnp.float32) + bc
    assert jnp.allclose(out, ref, atol=1e-3, rtol=1e-3), \
        float(jnp.max(jnp.abs(out - ref)))

    # Sanity vs the pure-f32 module math (difference is only bf16 rounding of
    # the matmul operands).
    ref32 = (jnp.tanh(x @ wa + ba) * jax.nn.sigmoid(x @ wb + bb)) @ wc + bc
    assert jnp.allclose(out, ref32, atol=5e-2, rtol=5e-2)

    # Exercise the general (n_classes > 1) MXU projection path as well.
    C2 = 4
    wc2, bc2 = _init_linear(jax.random.PRNGKey(1), D, C2)
    params2 = pack_attn_params(wa, ba, wb, bb, wc2, bc2)
    out2 = jax.block_until_ready(attn_net_gated_packed(x, params2))
    assert out2.shape == (N, C2)
    ref2 = jnp.dot((a_ref * b_ref).astype(jnp.bfloat16), wc2.astype(jnp.bfloat16),
                   preferred_element_type=jnp.float32) + bc2
    assert jnp.allclose(out2, ref2, atol=1e-3, rtol=1e-3), \
        float(jnp.max(jnp.abs(out2 - ref2)))

    print("KERNEL_OK")
</pallas_src>

<mosaic_0001>
module attributes {stable_mosaic.version = 11 : i64} {
  func.func @_gated_attn_kernel_c1(%arg0: i32, %arg1: memref<48x256xbf16, #tpu.memory_space<vmem>>, %arg2: memref<256x256xbf16, #tpu.memory_space<vmem>>, %arg3: memref<1x256xf32, #tpu.memory_space<vmem>>, %arg4: memref<1x128xf32, #tpu.memory_space<vmem>>, %arg5: memref<1x1xf32, #tpu.memory_space<vmem>>, %arg6: memref<1x48xf32, #tpu.memory_space<vmem>>) attributes {dimension_semantics = [#tpu.dimension_semantics<parallel>], iteration_bounds = array<i64: 1>, scalar_prefetch = 0 : i64, scratch_operands = 0 : i64, tpu.core_type = #tpu.core_type<tc>, window_params = [{transform_indices = @transform_0, window_bounds = array<i64: 48, 256>}, {pipeline_mode = #tpu.pipeline_mode<synchronous>, transform_indices = @transform_1, window_bounds = array<i64: 256, 256>}, {pipeline_mode = #tpu.pipeline_mode<synchronous>, transform_indices = @transform_2, window_bounds = array<i64: 1, 256>}, {pipeline_mode = #tpu.pipeline_mode<synchronous>, transform_indices = @transform_3, window_bounds = array<i64: 1, 128>}, {pipeline_mode = #tpu.pipeline_mode<synchronous>, transform_indices = @transform_4, window_bounds = array<i64: 1, 1>}, {transform_indices = @transform_5, window_bounds = array<i64: 1, 48>}]} {
    %c0 = arith.constant 0 : index
    %c0_0 = arith.constant 0 : index
    %0 = vector.load %arg1[%c0, %c0_0] : memref<48x256xbf16, #tpu.memory_space<vmem>>, vector<48x256xbf16>
    %c0_1 = arith.constant 0 : index
    %c0_2 = arith.constant 0 : index
    %1 = vector.load %arg2[%c0_1, %c0_2] : memref<256x256xbf16, #tpu.memory_space<vmem>>, vector<256x256xbf16>
    %cst = arith.constant dense<0.000000e+00> : vector<48x256xf32>
    %2 = tpu.matmul %0, %1, %cst {dimension_numbers = #tpu.dot_dimension_numbers<[1], [0], [0], [1], [0, 0, 1, 1], [], []>} : vector<48x256xbf16>, vector<256x256xbf16>, vector<48x256xf32> -> vector<48x256xf32>
    %c0_3 = arith.constant 0 : index
    %c0_4 = arith.constant 0 : index
    %3 = vector.load %arg3[%c0_3, %c0_4] : memref<1x256xf32, #tpu.memory_space<vmem>>, vector<1x256xf32>
    %4 = vector.broadcast %3 : vector<1x256xf32> to vector<48x256xf32>
    %5 = arith.addf %2, %4 : vector<48x256xf32>
    %6 = vector.extract_strided_slice %5 {offsets = [0, 0], sizes = [48, 128], strides = [1, 1]} : vector<48x256xf32> to vector<48x128xf32>
    %7 = math.tanh %6 : vector<48x128xf32>
    %8 = vector.extract_strided_slice %5 {offsets = [0, 128], sizes = [48, 128], strides = [1, 1]} : vector<48x256xf32> to vector<48x128xf32>
    %9 = arith.negf %8 : vector<48x128xf32>
    %10 = math.exp %9 : vector<48x128xf32>
    %cst_5 = arith.constant 1.000000e+00 : f32
    %11 = vector.broadcast %cst_5 : f32 to vector<48x128xf32>
    %12 = arith.addf %11, %10 : vector<48x128xf32>
    %13 = arith.divf %11, %12 : vector<48x128xf32>
    %14 = arith.mulf %7, %13 : vector<48x128xf32>
    %c0_6 = arith.constant 0 : index
    %c0_7 = arith.constant 0 : index
    %15 = vector.load %arg4[%c0_6, %c0_7] : memref<1x128xf32, #tpu.memory_space<vmem>>, vector<1x128xf32>
    %16 = vector.broadcast %15 : vector<1x128xf32> to vector<48x128xf32>
    %17 = arith.mulf %14, %16 : vector<48x128xf32>
    %cst_8 = arith.constant dense<0.000000e+00> : vector<48xf32>
    %18 = vector.multi_reduction <add>, %17, %cst_8 [1] : vector<48x128xf32> to vector<48xf32>
    %19 = vector.shape_cast %18 : vector<48xf32> to vector<48x1xf32>
    %c0_9 = arith.constant 0 : index
    %c0_10 = arith.constant 0 : index
    %20 = vector.load %arg5[%c0_9, %c0_10] : memref<1x1xf32, #tpu.memory_space<vmem>>, vector<1x1xf32>
    %21 = vector.broadcast %20 : vector<1x1xf32> to vector<48x1xf32>
    %22 = arith.addf %19, %21 : vector<48x1xf32>
    %23 = tpu.transpose %22, [1, 0] : vector<48x1xf32> -> vector<1x48xf32>
    %c0_11 = arith.constant 0 : index
    %c0_12 = arith.constant 0 : index
    %24 = vector.load %arg6[%c0_11, %c0_12] : memref<1x48xf32, #tpu.memory_space<vmem>>, vector<1x48xf32>
    tpu.vector_store %arg6[%c0_11, %c0_12], %23 {strides = array<i32>} : memref<1x48xf32, #tpu.memory_space<vmem>>, vector<1x48xf32>,
    return
  }
  func.func @transform_0(%arg0: i32) -> (i32, i32) {
    %c0_i32 = arith.constant 0 : i32
    %c0_i32_0 = arith.constant 0 : i32
    return %arg0, %c0_i32 : i32, i32
  }
  func.func @transform_1(%arg0: i32) -> (i32, i32) {
    %c0_i32 = arith.constant 0 : i32
    %c0_i32_0 = arith.constant 0 : i32
    %c0_i32_1 = arith.constant 0 : i32
    return %c0_i32, %c0_i32_0 : i32, i32
  }
  func.func @transform_2(%arg0: i32) -> (i32, i32) {
    %c0_i32 = arith.constant 0 : i32
    %c0_i32_0 = arith.constant 0 : i32
    %c0_i32_1 = arith.constant 0 : i32
    return %c0_i32, %c0_i32_0 : i32, i32
  }
  func.func @transform_3(%arg0: i32) -> (i32, i32) {
    %c0_i32 = arith.constant 0 : i32
    %c0_i32_0 = arith.constant 0 : i32
    %c0_i32_1 = arith.constant 0 : i32
    return %c0_i32, %c0_i32_0 : i32, i32
  }
  func.func @transform_4(%arg0: i32) -> (i32, i32) {
    %c0_i32 = arith.constant 0 : i32
    %c0_i32_0 = arith.constant 0 : i32
    %c0_i32_1 = arith.constant 0 : i32
    return %c0_i32, %c0_i32_0 : i32, i32
  }
  func.func @transform_5(%arg0: i32) -> (i32, i32) {
    %c0_i32 = arith.constant 0 : i32
    %c0_i32_0 = arith.constant 0 : i32
    return %c0_i32, %arg0 : i32, i32
  }
}

</mosaic_0001>

<llo_original>
// kernel: tpu_custom_call.1
$region0: #{tpu_custom_call.1}
  #allocation0 [shape = 'u32[]', space=smem, size = 0x4, offset = 0x4, fixed_abs, tag = 'smem constant byte address 0x4 - core index']
  #allocation1 [shape = 'u32[144,128]{1,0:T(1,128)}', space=vmem, size = 0x12000, scoped, tag = 'internal scratch']
  #allocation2 [shape = 'f32[1,1]{1,0:T(1,128)S(1)}', space=vmem, size = 0x200, scoped, tag = 'scoped memory for tpu_custom_call.1']
  %s0 = inlined_call_operand.hbm [shape: bf16[48,256], index: 0, kind: input, shape index: {}]
  %s1 = inlined_call_operand.hbm [shape: bf16[256,256], index: 1, kind: input, shape index: {}]
  %s2 = inlined_call_operand.vmem [shape: f32[1,256], index: 2, kind: input, shape index: {}]
  %s3 = inlined_call_operand.vmem [shape: f32[1,128], index: 3, kind: input, shape index: {}]
  %s4 = inlined_call_operand.<no memory space> [shape: f32[1,1], index: 4, kind: input, shape index: {}]
  %s5 = inlined_call_operand.hbm [shape: f32[1,48], index: 5, kind: output, shape index: {}]
  %s6 = sld [smem:[#allocation0]]
  $region38: #{tpu_custom_call.1} parent=0
    _
  %s8 = ssub.s32 1, %s6
  %s9 = scalar_select 0, %s8, %s6
  %v10 = vstv %s4
  %11 = vst [vmem:[#allocation2] sm:$0x1] %v10
  $region1: #{tpu_custom_call.1} parent=0
    #allocation3 [shape = 'u8[24576]{0}', space=vmem, size = 0x6000, scoped, tag = 'input window, operand 0, single buffered']
    #allocation4 [shape = 's32[1]{0}', space=sflag, size = 0x4, scoped, tag = 'scoped memory for tpu_custom_call.1']
    #allocation5 [shape = 's32[1]{0}', space=sflag, size = 0x4, scoped, tag = 'scoped memory for tpu_custom_call.1']
    #allocation6 [shape = 'u8[131072]{0}', space=vmem, size = 0x20000, scoped, tag = 'input window, operand 1, single buffered']
    #allocation7 [shape = 's32[1]{0}', space=sflag, size = 0x4, scoped, tag = 'scoped memory for tpu_custom_call.1']
    #allocation8 [shape = 'u8[512]{0}', space=vmem, size = 0x400, scoped, tag = 'output window, operand 0, single buffered']
    %12 = vsyncpa [#allocation4], 0
    %13 = vsyncpa [#allocation7], 0
    %14 = vsyncpa [#allocation5], 0
    // Predicated region
    $region2: #{tpu_custom_call.1} parent=1 // pred_check
      _
    $region3: #{tpu_custom_call.1} parent=1 // pred_check_branch
      %16 = sbr.rel (0) target = $region5
    $region4: #{tpu_custom_call.1} parent=1 // pred_region
      %s18 = ssub.s32 768, 768
      %19 = vsyncadd [#allocation4], %s18
      %s20 = sshll.u32 [#allocation3], 4
      %s21 = int_to_ptr.vmem [resolvable:$true] %s20
      %26 = dma.hbm_to_vmem [thread:$0]  %s0, 768, %s21, [#allocation4], 128, 128, 8
    $region5: #{tpu_custom_call.1} parent=1 // pred_fallthru
      _
    // Predicated region
    $region6: #{tpu_custom_call.1} parent=1 // pred_check
      _
    $region7: #{tpu_custom_call.1} parent=1 // pred_check_branch
      %28 = sbr.rel (0) target = $region9
    $region8: #{tpu_custom_call.1} parent=1 // pred_region
      %s30 = ssub.s32 4096, 4096
      %31 = vsyncadd [#allocation7], %s30
      %s32 = sshll.u32 [#allocation6], 4
      %s33 = int_to_ptr.vmem [resolvable:$true] %s32
      %38 = dma.hbm_to_vmem [thread:$0]  %s1, 4096, %s33, [#allocation7], 128, 128, 8
    $region9: #{tpu_custom_call.1} parent=1 // pred_fallthru
      _
    // Predicated region
    $region10: #{tpu_custom_call.1} parent=1 // pred_check
      _
    $region11: #{tpu_custom_call.1} parent=1 // pred_check_branch
      %40 = sbr.rel (0) target = $region13
    $region12: #{tpu_custom_call.1} parent=1 // pred_region
      _
    $region13: #{tpu_custom_call.1} parent=1 // pred_fallthru
      _
    // Predicated region
    $region14: #{tpu_custom_call.1} parent=1 // pred_check
      _
    $region15: #{tpu_custom_call.1} parent=1 // pred_check_branch
      %42 = sbr.rel (0) target = $region17
    $region16: #{tpu_custom_call.1} parent=1 // pred_region
      _
    $region17: #{tpu_custom_call.1} parent=1 // pred_fallthru
      _
    // Predicated region
    $region18: #{tpu_custom_call.1} parent=1 // pred_check
      _
    $region19: #{tpu_custom_call.1} parent=1 // pred_check_branch
      %44 = sbr.rel (0) target = $region21
    $region20: #{tpu_custom_call.1} parent=1 // pred_region
      _
    $region21: #{tpu_custom_call.1} parent=1 // pred_fallthru
      _
    // Predicated region
    $region22: #{tpu_custom_call.1} parent=1 // pred_check
      _
    $region23: #{tpu_custom_call.1} parent=1 // pred_check_branch
      %46 = sbr.rel (0) target = $region25
    $region24: #{tpu_custom_call.1} parent=1 // pred_region
      %47 = dma.done [#allocation4], 768
    $region25: #{tpu_custom_call.1} parent=1 // pred_fallthru
      _
    // Predicated region
    $region26: #{tpu_custom_call.1} parent=1 // pred_check
      _
    $region27: #{tpu_custom_call.1} parent=1 // pred_check_branch
      %49 = sbr.rel (0) target = $region29
    $region28: #{tpu_custom_call.1} parent=1 // pred_region
      %50 = dma.done [#allocation7], 4096
    $region29: #{tpu_custom_call.1} parent=1 // pred_fallthru
      _
    %v51 = vld [vmem:[#allocation3] sm:$0xff]
    %v52 = vld [vmem:[#allocation3 + $0x8] sm:$0xff]
    %v53 = vld [vmem:[#allocation3 + $0x10] sm:$0xff]
    %v54 = vld [vmem:[#allocation3 + $0x18] sm:$0xff]
    %v55 = vld [vmem:[#allocation3 + $0x20] sm:$0xff]
    %v56 = vld [vmem:[#allocation3 + $0x28] sm:$0xff]
    %v57 = vld [vmem:[#allocation6] sm:$0xff]
    %v58 = vld [vmem:[#allocation6 + $0x8] sm:$0xff]
    %v59 = vld [vmem:[#allocation6 + $0x10] sm:$0xff]
    %v60 = vld [vmem:[#allocation6 + $0x18] sm:$0xff]
    %v61 = vld [vmem:[#allocation6 + $0x20] sm:$0xff]
    %v62 = vld [vmem:[#allocation6 + $0x28] sm:$0xff]
    %v63 = vld [vmem:[#allocation6 + $0x30] sm:$0xff]
    %v64 = vld [vmem:[#allocation6 + $0x38] sm:$0xff]
    %v65 = vld [vmem:[#allocation6 + $0x40] sm:$0xff]
    %v66 = vld [vmem:[#allocation6 + $0x48] sm:$0xff]
    %v67 = vld [vmem:[#allocation6 + $0x50] sm:$0xff]
    %v68 = vld [vmem:[#allocation6 + $0x58] sm:$0xff]
    %v69 = vld [vmem:[#allocation6 + $0x60] sm:$0xff]
    %v70 = vld [vmem:[#allocation6 + $0x68] sm:$0xff]
    %v71 = vld [vmem:[#allocation6 + $0x70] sm:$0xff]
    %v72 = vld [vmem:[#allocation6 + $0x78] sm:$0xff]
    %v73 = vld [vmem:[#allocation6 + $0x80] sm:$0xff]
    %v74 = vld [vmem:[#allocation6 + $0x88] sm:$0xff]
    %v75 = vld [vmem:[#allocation6 + $0x90] sm:$0xff]
    %v76 = vld [vmem:[#allocation6 + $0x98] sm:$0xff]
    %v77 = vld [vmem:[#allocation6 + $0xa0] sm:$0xff]
    %v78 = vld [vmem:[#allocation6 + $0xa8] sm:$0xff]
    %v79 = vld [vmem:[#allocation6 + $0xb0] sm:$0xff]
    %v80 = vld [vmem:[#allocation6 + $0xb8] sm:$0xff]
    %v81 = vld [vmem:[#allocation6 + $0xc0] sm:$0xff]
    %v82 = vld [vmem:[#allocation6 + $0xc8] sm:$0xff]
    %v83 = vld [vmem:[#allocation6 + $0xd0] sm:$0xff]
    %v84 = vld [vmem:[#allocation6 + $0xd8] sm:$0xff]
    %v85 = vld [vmem:[#allocation6 + $0xe0] sm:$0xff]
    %v86 = vld [vmem:[#allocation6 + $0xe8] sm:$0xff]
    %v87 = vld [vmem:[#allocation6 + $0xf0] sm:$0xff]
    %v88 = vld [vmem:[#allocation6 + $0xf8] sm:$0xff]
    %v89 = vld [vmem:[%s2] sm:$0x3]
    %v91 = vlaneseq
    %v92 = vshrl.u32 %v91, 7
    %v93 = vsub.s32 0, %v92
    %v94 = vrot.slane %v89, %v93
    %v95 = vlaneseq
    %v96 = vshrl.u32 %v95, 7
    %v97 = vsub.s32 1, %v96
    %v98 = vrot.slane %v89, %v97
    %v107 = vunpack.c.l.b16 %v51
    %v108 = vunpack.c.h.b16 %v51
    %v109 = vunpack.c.l.b16 %v52
    %v110 = vunpack.c.h.b16 %v52
    %v111 = vunpack.c.l.b16 %v53
    %v112 = vunpack.c.h.b16 %v53
    %v113 = vunpack.c.l.b16 %v54
    %v114 = vunpack.c.h.b16 %v54
    %v115 = vunpack.c.l.b16 %v55
    %v116 = vunpack.c.h.b16 %v55
    %v117 = vunpack.c.l.b16 %v56
    %v118 = vunpack.c.h.b16 %v56
    %v119 = vpack.c.b16 %v109, %v107
    %v120 = vpack.c.b16 %v110, %v108
    %v121 = vpack.c.b16 %v113, %v111
    %v122 = vpack.c.b16 %v114, %v112
    %v123 = vpack.c.b16 %v117, %v115
    %v124 = vpack.c.b16 %v118, %v116
    %v163 = vunpack.c.l.b16 %v57
    %v164 = vunpack.c.h.b16 %v57
    %v165 = vunpack.c.l.b16 %v58
    %v166 = vunpack.c.h.b16 %v58
    %v167 = vunpack.c.l.b16 %v59
    %v168 = vunpack.c.h.b16 %v59
    %v169 = vunpack.c.l.b16 %v60
    %v170 = vunpack.c.h.b16 %v60
    %v171 = vunpack.c.l.b16 %v61
    %v172 = vunpack.c.h.b16 %v61
    %v173 = vunpack.c.l.b16 %v62
    %v174 = vunpack.c.h.b16 %v62
    %v175 = vunpack.c.l.b16 %v63
    %v176 = vunpack.c.h.b16 %v63
    %v177 = vunpack.c.l.b16 %v64
    %v178 = vunpack.c.h.b16 %v64
    %v179 = vunpack.c.l.b16 %v65
    %v180 = vunpack.c.h.b16 %v65
    %v181 = vunpack.c.l.b16 %v66
    %v182 = vunpack.c.h.b16 %v66
    %v183 = vunpack.c.l.b16 %v67
    %v184 = vunpack.c.h.b16 %v67
    %v185 = vunpack.c.l.b16 %v68
    %v186 = vunpack.c.h.b16 %v68
    %v187 = vunpack.c.l.b16 %v69
    %v188 = vunpack.c.h.b16 %v69
    %v189 = vunpack.c.l.b16 %v70
    %v190 = vunpack.c.h.b16 %v70
    %v191 = vunpack.c.l.b16 %v71
    %v192 = vunpack.c.h.b16 %v71
    %v193 = vunpack.c.l.b16 %v72
    %v194 = vunpack.c.h.b16 %v72
    %v195 = vunpack.c.l.b16 %v73
    %v196 = vunpack.c.h.b16 %v73
    %v197 = vunpack.c.l.b16 %v74
    %v198 = vunpack.c.h.b16 %v74
    %v199 = vunpack.c.l.b16 %v75
    %v200 = vunpack.c.h.b16 %v75
    %v201 = vunpack.c.l.b16 %v76
    %v202 = vunpack.c.h.b16 %v76
    %v203 = vunpack.c.l.b16 %v77
    %v204 = vunpack.c.h.b16 %v77
    %v205 = vunpack.c.l.b16 %v78
    %v206 = vunpack.c.h.b16 %v78
    %v207 = vunpack.c.l.b16 %v79
    %v208 = vunpack.c.h.b16 %v79
    %v209 = vunpack.c.l.b16 %v80
    %v210 = vunpack.c.h.b16 %v80
    %v211 = vunpack.c.l.b16 %v81
    %v212 = vunpack.c.h.b16 %v81
    %v213 = vunpack.c.l.b16 %v82
    %v214 = vunpack.c.h.b16 %v82
    %v215 = vunpack.c.l.b16 %v83
    %v216 = vunpack.c.h.b16 %v83
    %v217 = vunpack.c.l.b16 %v84
    %v218 = vunpack.c.h.b16 %v84
    %v219 = vunpack.c.l.b16 %v85
    %v220 = vunpack.c.h.b16 %v85
    %v221 = vunpack.c.l.b16 %v86
    %v222 = vunpack.c.h.b16 %v86
    %v223 = vunpack.c.l.b16 %v87
    %v224 = vunpack.c.h.b16 %v87
    %v225 = vunpack.c.l.b16 %v88
    %v226 = vunpack.c.h.b16 %v88
    %v227 = vpack.c.b16 %v165, %v163
    %v228 = vpack.c.b16 %v166, %v164
    %v229 = vpack.c.b16 %v169, %v167
    %v230 = vpack.c.b16 %v170, %v168
    %v231 = vpack.c.b16 %v173, %v171
    %v232 = vpack.c.b16 %v174, %v172
    %v233 = vpack.c.b16 %v177, %v175
    %v234 = vpack.c.b16 %v178, %v176
    %v235 = vpack.c.b16 %v181, %v179
    %v236 = vpack.c.b16 %v182, %v180
    %v237 = vpack.c.b16 %v185, %v183
    %v238 = vpack.c.b16 %v186, %v184
    %v239 = vpack.c.b16 %v189, %v187
    %v240 = vpack.c.b16 %v190, %v188
    %v241 = vpack.c.b16 %v193, %v191
    %v242 = vpack.c.b16 %v194, %v192
    %v243 = vpack.c.b16 %v197, %v195
    %v244 = vpack.c.b16 %v198, %v196
    %v245 = vpack.c.b16 %v201, %v199
    %v246 = vpack.c.b16 %v202, %v200
    %v247 = vpack.c.b16 %v205, %v203
    %v248 = vpack.c.b16 %v206, %v204
    %v249 = vpack.c.b16 %v209, %v207
    %v250 = vpack.c.b16 %v210, %v208
    %v251 = vpack.c.b16 %v213, %v211
    %v252 = vpack.c.b16 %v214, %v212
    %v253 = vpack.c.b16 %v217, %v215
    %v254 = vpack.c.b16 %v218, %v216
    %v255 = vpack.c.b16 %v221, %v219
    %v256 = vpack.c.b16 %v222, %v220
    %v257 = vpack.c.b16 %v225, %v223
    %v258 = vpack.c.b16 %v226, %v224
    %291 = vmatprep.subr.bf16.mxu0 %v228
    %292 = vmatpush1.bf16.msra.mxu0 %v227
    %293 = vmatprep.subr.bf16.mxu0 %v230
    %294 = vmatpush1.bf16.msra.mxu0 %v229
    %295 = vmatprep.subr.bf16.mxu0 %v232
    %296 = vmatpush1.bf16.msra.mxu0 %v231
    %297 = vmatprep.subr.bf16.mxu0 %v234
    %298 = vmatpush1.bf16.msra.mxu0 %v233
    %299 = vmatprep.subr.bf16.mxu0 %v236
    %300 = vmatpush1.bf16.msra.mxu0 %v235
    %301 = vmatprep.subr.bf16.mxu0 %v238
    %302 = vmatpush1.bf16.msra.mxu0 %v237
    %303 = vmatprep.subr.bf16.mxu0 %v240
    %304 = vmatpush1.bf16.msra.mxu0 %v239
    %305 = vmatprep.subr.bf16.mxu0 %v242
    %306 = vmatpush1.bf16.msra.mxu0 %v241
    %307 = vmatprep.subr.bf16.mxu0 %v244
    %308 = vmatpush1.bf16.msra.mxu0 %v243
    %309 = vmatprep.subr.bf16.mxu0 %v246
    %310 = vmatpush1.bf16.msra.mxu0 %v245
    %311 = vmatprep.subr.bf16.mxu0 %v248
    %312 = vmatpush1.bf16.msra.mxu0 %v247
    %313 = vmatprep.subr.bf16.mxu0 %v250
    %314 = vmatpush1.bf16.msra.mxu0 %v249
    %315 = vmatprep.subr.bf16.mxu0 %v252
    %316 = vmatpush1.bf16.msra.mxu0 %v251
    %317 = vmatprep.subr.bf16.mxu0 %v254
    %318 = vmatpush1.bf16.msra.mxu0 %v253
    %319 = vmatprep.subr.bf16.mxu0 %v256
    %320 = vmatpush1.bf16.msra.mxu0 %v255
    %321 = vmatprep.subr.bf16.mxu0 %v258
    %322 = vmatpush1.bf16.msra.mxu0 %v257
    %323 = vmatprep.mubr.bf16.mxu0 %v120
    %324 = vmatmul.mubr.bf16.gmra.mrb[0].mxu0 %v119
    %v325 = vpop.f32.mrb[0].mxu0
    %v326 = vadd.f32 %v94, %v325
    %v327 = vpop.f32.mrb[0].mxu0
    %v328 = vadd.f32 %v98, %v327
    %v329 = vpop.f32.mrb[0].mxu0
    %v330 = vadd.f32 %v94, %v329
    %v331 = vpop.f32.mrb[0].mxu0
    %v332 = vadd.f32 %v98, %v331
    %333 = vmatprep.mubr.bf16.mxu0 %v122
    %334 = vmatmul.mubr.bf16.gmra.mrb[0].mxu0 %v121
    %v335 = vpop.f32.mrb[0].mxu0
    %v336 = vadd.f32 %v94, %v335
    %v337 = vpop.f32.mrb[0].mxu0
    %v338 = vadd.f32 %v98, %v337
    %v339 = vpop.f32.mrb[0].mxu0
    %v340 = vadd.f32 %v94, %v339
    %v341 = vpop.f32.mrb[0].mxu0
    %v342 = vadd.f32 %v98, %v341
    %343 = vmatprep.mubr.bf16.mxu0 %v124
    %344 = vmatmul.mubr.bf16.gmra.mrb[0].mxu0 %v123
    %v345 = vpop.f32.mrb[0].mxu0
    %v346 = vadd.f32 %v94, %v345
    %v347 = vpop.f32.mrb[0].mxu0
    %v348 = vadd.f32 %v98, %v347
    %v349 = vpop.f32.mrb[0].mxu0
    %v350 = vadd.f32 %v94, %v349
    %v351 = vpop.f32.mrb[0].mxu0
    %v352 = vadd.f32 %v98, %v351
    %353 = vdwg.mxu0
    %v354 = vtanh.pop %v326
    %v355 = vtanh.pop %v330
    %v356 = vtanh.pop %v336
    %v357 = vtanh.pop %v340
    %v358 = vtanh.pop %v346
    %v359 = vtanh.pop %v350
    %v360 = vxor.u32 %v328, 2147483648
    %v361 = vxor.u32 %v332, 2147483648
    %v362 = vxor.u32 %v338, 2147483648
    %v363 = vxor.u32 %v342, 2147483648
    %v364 = vxor.u32 %v348, 2147483648
    %v365 = vxor.u32 %v352, 2147483648
    %v366 = vmul.f32 %v360, 1.442695
    %v367 = vpow.pop %v366
    %v368 = vmul.f32 %v361, 1.442695
    %v369 = vpow.pop %v368
    %v370 = vmul.f32 %v362, 1.442695
    %v371 = vpow.pop %v370
    %v372 = vmul.f32 %v363, 1.442695
    %v373 = vpow.pop %v372
    %v374 = vmul.f32 %v364, 1.442695
    %v375 = vpow.pop %v374
    %v376 = vmul.f32 %v365, 1.442695
    %v377 = vpow.pop %v376
    %v378 = vadd.f32 %v367, 1.0
    %v379 = vadd.f32 %v369, 1.0
    %v380 = vadd.f32 %v371, 1.0
    %v381 = vadd.f32 %v373, 1.0
    %v382 = vadd.f32 %v375, 1.0
    %v383 = vadd.f32 %v377, 1.0
    %v384 = vrcp.pop %v378
    %v385 = vmul.f32 1.0, %v384
    %v386 = vrcp.pop %v379
    %v387 = vmul.f32 1.0, %v386
    %v388 = vrcp.pop %v380
    %v389 = vmul.f32 1.0, %v388
    %v390 = vrcp.pop %v381
    %v391 = vmul.f32 1.0, %v390
    %v392 = vrcp.pop %v382
    %v393 = vmul.f32 1.0, %v392
    %v394 = vrcp.pop %v383
    %v395 = vmul.f32 1.0, %v394
    %v396 = vmul.f32 %v354, %v385
    %v397 = vmul.f32 %v355, %v387
    %v398 = vmul.f32 %v356, %v389
    %v399 = vmul.f32 %v357, %v391
    %v400 = vmul.f32 %v358, %v393
    %v401 = vmul.f32 %v359, %v395
    %v402 = vld [vmem:[%s3] sm:$0x1]
    %v404 = vlaneseq
    %v405 = vshrl.u32 %v404, 7
    %v406 = vsub.s32 0, %v405
    %v407 = vrot.slane %v402, %v406
    %v409 = vmul.f32 %v396, %v407
    %v410 = vmul.f32 %v397, %v407
    %v411 = vmul.f32 %v398, %v407
    %v412 = vmul.f32 %v399, %v407
    %v413 = vmul.f32 %v400, %v407
    %v414 = vmul.f32 %v401, %v407
    %415 = vadd.xlane.f32.xlu0 %v409
    %v416 = vpop.xlane.xlu0 %415
    %417 = vadd.xlane.f32.xlu0 %v410
    %v418 = vpop.xlane.xlu0 %417
    %419 = vadd.xlane.f32.xlu0 %v411
    %v420 = vpop.xlane.xlu0 %419
    %421 = vadd.xlane.f32.xlu0 %v412
    %v422 = vpop.xlane.xlu0 %421
    %423 = vadd.xlane.f32.xlu0 %v413
    %v424 = vpop.xlane.xlu0 %423
    %425 = vadd.xlane.f32.xlu0 %v414
    %v426 = vpop.xlane.xlu0 %425
    %v427 = vld [vmem:[#allocation2] sm:$0x1]
    %v429 = vlaneseq
    %v430 = vshrl.u32 %v429, 7
    %v431 = vsub.s32 0, %v430
    %v432 = vrot.slane %v427, %v431
    %v434 = vadd.f32 %v416, %v432
    %v435 = vadd.f32 %v418, %v432
    %v436 = vadd.f32 %v420, %v432
    %v437 = vadd.f32 %v422, %v432
    %v438 = vadd.f32 %v424, %v432
    %v439 = vadd.f32 %v426, %v432
    %440 = vxpose.xlu0.b32.start [1/16] %v434, 128
    %441 = vxpose.xlu0.b32.cont [2/16] %v435, 128
    %442 = vxpose.xlu0.b32.cont [3/16] %v436, 128
    %443 = vxpose.xlu0.b32.cont [4/16] %v437, 128
    %444 = vxpose.xlu0.b32.cont [5/16] %v438, 128
    %445 = vxpose.xlu0.b32.cont [6/16] %v439, 128
    %446 = vxpose.xlu0.b32.cont [7/16] 0.0, 128
    %447 = vxpose.xlu0.b32.cont [8/16] 0.0, 128
    %448 = vxpose.xlu0.b32.cont [9/16] 0.0, 128
    %449 = vxpose.xlu0.b32.cont [10/16] 0.0, 128
    %450 = vxpose.xlu0.b32.cont [11/16] 0.0, 128
    %451 = vxpose.xlu0.b32.cont [12/16] 0.0, 128
    %452 = vxpose.xlu0.b32.cont [13/16] 0.0, 128
    %453 = vxpose.xlu0.b32.cont [14/16] 0.0, 128
    %454 = vxpose.xlu0.b32.cont [15/16] 0.0, 128
    %455 = vxpose.xlu0.b32.end [16/16] 0.0, 128
    %v456 = vpop.trf.xlu0
    %v457 = vpop.trf.xlu0
    %v458 = vpop.trf.xlu0
    %v459 = vpop.trf.xlu0
    %v460 = vpop.trf.xlu0
    %v461 = vpop.trf.xlu0
    %v462 = vpop.trf.xlu0
    %v463 = vpop.trf.xlu0
    %v464 = vpop.trf.xlu0
    %v465 = vpop.trf.xlu0
    %v466 = vpop.trf.xlu0
    %v467 = vpop.trf.xlu0
    %v468 = vpop.trf.xlu0
    %v469 = vpop.trf.xlu0
    %v470 = vpop.trf.xlu0
    %v471 = vpop.trf.xlu0
    %vm472 = vcmask 385024
    %473 = vst.msk [vmem:[#allocation8] sm:$0x1] %vm472, %v456
    // Predicated region
    $region30: #{tpu_custom_call.1} parent=1 // pred_check
      _
    $region31: #{tpu_custom_call.1} parent=1 // pred_check_branch
      %475 = sbr.rel (0) target = $region33
    $region32: #{tpu_custom_call.1} parent=1 // pred_region
      %s477 = ssub.s32 16, 16
      %478 = vsyncadd [#allocation5], %s477
      %s480 = sshll.u32 [#allocation8], 4
      %s481 = int_to_ptr.vmem [resolvable:$true] %s480
      %483 = dma.vmem_to_hbm [thread:$0]  %s481, 16, %s5, [#allocation5]
    $region33: #{tpu_custom_call.1} parent=1 // pred_fallthru
      _
    // Predicated region
    $region34: #{tpu_custom_call.1} parent=1 // pred_check
      _
    $region35: #{tpu_custom_call.1} parent=1 // pred_check_branch
      %485 = sbr.rel (0) target = $region37
    $region36: #{tpu_custom_call.1} parent=1 // pred_region
      %486 = dma.done [#allocation5], 16
    $region37: #{tpu_custom_call.1} parent=1 // pred_fallthru
      _
    %487 = vsyncpa [#allocation4], 1
    %488 = vsyncpa [#allocation7], 1
    %489 = vsyncpa [#allocation5], 1

</llo_original>
